<compile_context>
chip_gen: v7x
topology: tpu7x:2x2x1
jax: 0.10.0
libtpu: 0.0.40
codegen_flags: <defaults>
</compile_context>

<pallas_src>
import jax
import jax.numpy as jnp
from jax.experimental import pallas as pl
from jax.experimental.pallas import tpu as pltpu


def conv1x1_sigmoid_kernel(w_ref, b_ref, x_ref, o_ref):
    # w_ref: (C_out, C_in)   b_ref: (C_out, 1)
    # x_ref: (Nb, C_in, HW)  o_ref: (Nb, C_out, HW)
    nb = x_ref.shape[0]  # static at trace time; unrolled below
    w = w_ref[...]
    b = b_ref[...]  # (C_out, 1) — broadcasts along the lane (pixel) axis
    for i in range(nb):
        acc = jnp.dot(w, x_ref[i], preferred_element_type=jnp.float32)
        acc = acc + b
        # Single-transcendental sigmoid: sigmoid(x) == 0.5*(tanh(0.5*x)+1).
        o_ref[i] = (0.5 * (jnp.tanh(0.5 * acc) + 1.0)).astype(o_ref.dtype)


def conv1x1_sigmoid(x_nchw, weight, bias, *, images_per_step=8):
    """x_nchw: (N, C_in, H, W); weight: (C_out, C_in, 1, 1); bias: (C_out,)."""
    N, C_in, H, W = x_nchw.shape
    C_out = weight.shape[0]
    HW = H * W

    # Pick the largest Nb <= images_per_step that divides N (exact blocks,
    # no masked partial writes).  For N == 1 this degenerates to 1 image/step.
    nb = 1
    for cand in range(min(images_per_step, N), 0, -1):
        if N % cand == 0:
            nb = cand
            break

    # No transposes: NCHW rows are already channel-major / pixel-lane-major.
    x_rows = x_nchw.reshape(N, C_in, HW)     # (N, C_in, HW)
    w_mat = weight.reshape(C_out, C_in)      # (C_out, C_in)
    b_col = bias.reshape(C_out, 1)           # (C_out, 1)

    cost = pl.CostEstimate(
        flops=2 * N * C_out * C_in * HW,
        transcendentals=N * C_out * HW,
        bytes_accessed=4 * (N * C_in * HW + N * C_out * HW + C_out * C_in + C_out),
    )

    out = pl.pallas_call(
        conv1x1_sigmoid_kernel,
        out_shape=jax.ShapeDtypeStruct((N, C_out, HW), x_nchw.dtype),
        grid=(N // nb,),
        in_specs=[
            pl.BlockSpec((C_out, C_in), lambda n: (0, 0)),   # W, resident
            pl.BlockSpec((C_out, 1), lambda n: (0, 0)),      # bias, resident
            pl.BlockSpec((nb, C_in, HW), lambda n: (n, 0, 0)),
        ],
        out_specs=pl.BlockSpec((nb, C_out, HW), lambda n: (n, 0, 0)),
        compiler_params=pltpu.CompilerParams(
            dimension_semantics=("parallel",)
        ),
        cost_estimate=cost,
    )(w_mat, b_col, x_rows)

    return out.reshape(N, C_out, H, W)


if __name__ == "__main__":
    key = jax.random.PRNGKey(0)
    k_x, k_w, k_b = jax.random.split(key, 3)

    # Small shapes consistent with Conv2d(5, 10, 1): batch=2, 16x16 spatial.
    N, C_in, H, W = 2, 5, 16, 16
    C_out = 10

    x1 = jax.random.normal(k_x, (N, C_in, H, W), dtype=jnp.float32)
    # Deterministic parameter init (matches Conv2d(5, 10, 1) param shapes).
    fan_in = C_in * 1 * 1
    bound = 1.0 / jnp.sqrt(fan_in)
    weight = jax.random.uniform(k_w, (C_out, C_in, 1, 1), jnp.float32, -bound, bound)
    bias = jax.random.uniform(k_b, (C_out,), jnp.float32, -bound, bound)

    out = conv1x1_sigmoid(x1, weight, bias)
    jax.block_until_ready(out)

    # Reference check in plain JAX (1x1 conv == channel matmul).
    ref = jax.nn.sigmoid(
        jnp.einsum("nchw,oc->nohw", x1, weight.reshape(C_out, C_in))
        + bias[None, :, None, None]
    )
    assert out.shape == (N, C_out, H, W)
    assert jnp.allclose(out, ref, atol=1e-5, rtol=1e-5)

    print("KERNEL_OK")
</pallas_src>

<mosaic_0001>
module attributes {stable_mosaic.version = 11 : i64} {
  func.func @conv1x1_sigmoid_kernel(%arg0: i32, %arg1: memref<10x5xf32, #tpu.memory_space<vmem>>, %arg2: memref<10x1xf32, #tpu.memory_space<vmem>>, %arg3: memref<2x5x256xf32, #tpu.memory_space<vmem>>, %arg4: memref<2x10x256xf32, #tpu.memory_space<vmem>>) attributes {dimension_semantics = [#tpu.dimension_semantics<parallel>], iteration_bounds = array<i64: 1>, scalar_prefetch = 0 : i64, scratch_operands = 0 : i64, tpu.core_type = #tpu.core_type<tc>, window_params = [{pipeline_mode = #tpu.pipeline_mode<synchronous>, transform_indices = @transform_0, window_bounds = array<i64: 10, 5>}, {pipeline_mode = #tpu.pipeline_mode<synchronous>, transform_indices = @transform_1, window_bounds = array<i64: 10, 1>}, {transform_indices = @transform_2, window_bounds = array<i64: 2, 5, 256>}, {transform_indices = @transform_3, window_bounds = array<i64: 2, 10, 256>}]} {
    %c0 = arith.constant 0 : index
    %c0_0 = arith.constant 0 : index
    %0 = vector.load %arg1[%c0, %c0_0] : memref<10x5xf32, #tpu.memory_space<vmem>>, vector<10x5xf32>
    %c0_1 = arith.constant 0 : index
    %c0_2 = arith.constant 0 : index
    %1 = vector.load %arg2[%c0_1, %c0_2] : memref<10x1xf32, #tpu.memory_space<vmem>>, vector<10x1xf32>
    %c0_3 = arith.constant 0 : index
    %c0_4 = arith.constant 0 : index
    %c0_5 = arith.constant 0 : index
    %2 = vector.load %arg3[%c0_3, %c0_4, %c0_5] : memref<2x5x256xf32, #tpu.memory_space<vmem>>, vector<1x5x256xf32>
    %3 = vector.shape_cast %2 : vector<1x5x256xf32> to vector<5x256xf32>
    %cst = arith.constant dense<0.000000e+00> : vector<10x256xf32>
    %4 = tpu.matmul %0, %3, %cst {dimension_numbers = #tpu.dot_dimension_numbers<[1], [0], [0], [1], [0, 0, 1, 1], [], []>} : vector<10x5xf32>, vector<5x256xf32>, vector<10x256xf32> -> vector<10x256xf32>
    %5 = vector.broadcast %1 : vector<10x1xf32> to vector<10x256xf32>
    %6 = arith.addf %4, %5 : vector<10x256xf32>
    %cst_6 = arith.constant 5.000000e-01 : f32
    %7 = vector.broadcast %cst_6 : f32 to vector<10x256xf32>
    %8 = arith.mulf %7, %6 : vector<10x256xf32>
    %9 = math.tanh %8 : vector<10x256xf32>
    %cst_7 = arith.constant 1.000000e+00 : f32
    %10 = vector.broadcast %cst_7 : f32 to vector<10x256xf32>
    %11 = arith.addf %9, %10 : vector<10x256xf32>
    %cst_8 = arith.constant 5.000000e-01 : f32
    %12 = vector.broadcast %cst_8 : f32 to vector<10x256xf32>
    %13 = arith.mulf %12, %11 : vector<10x256xf32>
    %c0_9 = arith.constant 0 : index
    %c0_10 = arith.constant 0 : index
    %c0_11 = arith.constant 0 : index
    %14 = vector.load %arg4[%c0_9, %c0_10, %c0_11] : memref<2x10x256xf32, #tpu.memory_space<vmem>>, vector<1x10x256xf32>
    %15 = vector.shape_cast %14 : vector<1x10x256xf32> to vector<10x256xf32>
    %16 = vector.shape_cast %13 : vector<10x256xf32> to vector<1x10x256xf32>
    tpu.vector_store %arg4[%c0_9, %c0_10, %c0_11], %16 {strides = array<i32>} : memref<2x10x256xf32, #tpu.memory_space<vmem>>, vector<1x10x256xf32>,
    %c1 = arith.constant 1 : index
    %c0_12 = arith.constant 0 : index
    %c0_13 = arith.constant 0 : index
    %17 = vector.load %arg3[%c1, %c0_12, %c0_13] : memref<2x5x256xf32, #tpu.memory_space<vmem>>, vector<1x5x256xf32>
    %18 = vector.shape_cast %17 : vector<1x5x256xf32> to vector<5x256xf32>
    %cst_14 = arith.constant dense<0.000000e+00> : vector<10x256xf32>
    %19 = tpu.matmul %0, %18, %cst_14 {dimension_numbers = #tpu.dot_dimension_numbers<[1], [0], [0], [1], [0, 0, 1, 1], [], []>} : vector<10x5xf32>, vector<5x256xf32>, vector<10x256xf32> -> vector<10x256xf32>
    %20 = vector.broadcast %1 : vector<10x1xf32> to vector<10x256xf32>
    %21 = arith.addf %19, %20 : vector<10x256xf32>
    %cst_15 = arith.constant 5.000000e-01 : f32
    %22 = vector.broadcast %cst_15 : f32 to vector<10x256xf32>
    %23 = arith.mulf %22, %21 : vector<10x256xf32>
    %24 = math.tanh %23 : vector<10x256xf32>
    %cst_16 = arith.constant 1.000000e+00 : f32
    %25 = vector.broadcast %cst_16 : f32 to vector<10x256xf32>
    %26 = arith.addf %24, %25 : vector<10x256xf32>
    %cst_17 = arith.constant 5.000000e-01 : f32
    %27 = vector.broadcast %cst_17 : f32 to vector<10x256xf32>
    %28 = arith.mulf %27, %26 : vector<10x256xf32>
    %c1_18 = arith.constant 1 : index
    %c0_19 = arith.constant 0 : index
    %c0_20 = arith.constant 0 : index
    %29 = vector.load %arg4[%c1_18, %c0_19, %c0_20] : memref<2x10x256xf32, #tpu.memory_space<vmem>>, vector<1x10x256xf32>
    %30 = vector.shape_cast %29 : vector<1x10x256xf32> to vector<10x256xf32>
    %31 = vector.shape_cast %28 : vector<10x256xf32> to vector<1x10x256xf32>
    tpu.vector_store %arg4[%c1_18, %c0_19, %c0_20], %31 {strides = array<i32>} : memref<2x10x256xf32, #tpu.memory_space<vmem>>, vector<1x10x256xf32>,
    return
  }
  func.func @transform_0(%arg0: i32) -> (i32, i32) {
    %c0_i32 = arith.constant 0 : i32
    %c0_i32_0 = arith.constant 0 : i32
    %c0_i32_1 = arith.constant 0 : i32
    return %c0_i32, %c0_i32_0 : i32, i32
  }
  func.func @transform_1(%arg0: i32) -> (i32, i32) {
    %c0_i32 = arith.constant 0 : i32
    %c0_i32_0 = arith.constant 0 : i32
    %c0_i32_1 = arith.constant 0 : i32
    return %c0_i32, %c0_i32_0 : i32, i32
  }
  func.func @transform_2(%arg0: i32) -> (i32, i32, i32) {
    %c0_i32 = arith.constant 0 : i32
    %c0_i32_0 = arith.constant 0 : i32
    %c0_i32_1 = arith.constant 0 : i32
    return %arg0, %c0_i32, %c0_i32_0 : i32, i32, i32
  }
  func.func @transform_3(%arg0: i32) -> (i32, i32, i32) {
    %c0_i32 = arith.constant 0 : i32
    %c0_i32_0 = arith.constant 0 : i32
    %c0_i32_1 = arith.constant 0 : i32
    return %arg0, %c0_i32, %c0_i32_0 : i32, i32, i32
  }
}

</mosaic_0001>

<llo_original>
// kernel: tpu_custom_call.1
$region0: #{tpu_custom_call.1}
  #allocation0 [shape = 'u32[]', space=smem, size = 0x4, offset = 0x4, fixed_abs, tag = 'smem constant byte address 0x4 - core index']
  #allocation1 [shape = 'u32[144,128]{1,0:T(1,128)}', space=vmem, size = 0x12000, scoped, tag = 'internal scratch']
  %s0 = inlined_call_operand.vmem [shape: f32[10,5], index: 0, kind: input, shape index: {}]
  %s1 = inlined_call_operand.vmem [shape: f32[10,1], index: 1, kind: input, shape index: {}]
  %s2 = inlined_call_operand.vmem [shape: f32[2,5,256], index: 2, kind: input, shape index: {}]
  %s3 = inlined_call_operand.vmem [shape: f32[2,10,256], index: 3, kind: output, shape index: {}]
  %s4 = sld [smem:[#allocation0]]
  $region22: #{tpu_custom_call.1} parent=0
    _
  %s6 = ssub.s32 1, %s4
  %s7 = scalar_select 0, %s6, %s4
  // Predicated region
  $region2: #{tpu_custom_call.1} parent=0 // pred_check
    _
  $region3: #{tpu_custom_call.1} parent=0 // pred_check_branch
    %9 = sbr.rel (0) target = $region5
  $region4: #{tpu_custom_call.1} parent=0 // pred_region
    _
  $region5: #{tpu_custom_call.1} parent=0 // pred_fallthru
    _
  // Predicated region
  $region6: #{tpu_custom_call.1} parent=0 // pred_check
    _
  $region7: #{tpu_custom_call.1} parent=0 // pred_check_branch
    %11 = sbr.rel (0) target = $region9
  $region8: #{tpu_custom_call.1} parent=0 // pred_region
    _
  $region9: #{tpu_custom_call.1} parent=0 // pred_fallthru
    _
  // Predicated region
  $region10: #{tpu_custom_call.1} parent=0 // pred_check
    _
  $region11: #{tpu_custom_call.1} parent=0 // pred_check_branch
    %13 = sbr.rel (0) target = $region13
  $region12: #{tpu_custom_call.1} parent=0 // pred_region
    _
  $region13: #{tpu_custom_call.1} parent=0 // pred_fallthru
    _
  %v14 = vld [vmem:[%s0] sm:$0xff]
  %v15 = vld [vmem:[%s0 + $0x8] sm:$0x3]
  %v16 = vld [vmem:[%s1] sm:$0xff]
  %v17 = vld [vmem:[%s1 + $0x8] sm:$0x3]
  %v18 = vld [vmem:[%s2] sm:$0x1f]
  %v19 = vld [vmem:[%s2 + $0x8] sm:$0x1f]
  %21 = vset.pattern.permute.xlu0 0
  %22 = vperm.xlu0 %21, %v16
  %v23 = vpop.permute.xlu0 %22
  %26 = vset.pattern.permute.xlu0 0
  %27 = vperm.xlu0 %26, %v17
  %v28 = vpop.permute.xlu0 %27
  %vm30 = vcmask 39936
  %v32 = vsel %vm30, %v14, 0
  %v35 = vsel %vm30, %v15, 0
  %vm37 = vcmask 1044480
  %v39 = vsel %vm37, %v18, 0
  %v42 = vsel %vm37, %v19, 0
  %44 = vmatprep.subr.mxu0 %v42
  %45 = vmatpush1.msra.mxu0 %v39
  %46 = vmatprep.subr.mxu0 0.0
  %47 = vmatpush1.msra.mxu0 0.0
  %48 = vmatprep.subr.mxu0 0.0
  %49 = vmatpush1.msra.mxu0 0.0
  %50 = vmatprep.subr.mxu0 0.0
  %51 = vmatpush1.msra.mxu0 0.0
  %52 = vmatprep.subr.mxu0 0.0
  %53 = vmatpush1.msra.mxu0 0.0
  %54 = vmatprep.subr.mxu0 0.0
  %55 = vmatpush1.msra.mxu0 0.0
  %56 = vmatprep.subr.mxu0 0.0
  %57 = vmatpush1.msra.mxu0 0.0
  %58 = vmatprep.subr.mxu0 0.0
  %59 = vmatpush1.msra.mxu0 0.0
  %60 = vmatprep.subr.mxu0 0.0
  %61 = vmatpush1.msra.mxu0 0.0
  %62 = vmatprep.subr.mxu0 0.0
  %63 = vmatpush1.msra.mxu0 0.0
  %64 = vmatprep.subr.mxu0 0.0
  %65 = vmatpush1.msra.mxu0 0.0
  %66 = vmatprep.subr.mxu0 0.0
  %67 = vmatpush1.msra.mxu0 0.0
  %68 = vmatprep.subr.mxu0 0.0
  %69 = vmatpush1.msra.mxu0 0.0
  %70 = vmatprep.subr.mxu0 0.0
  %71 = vmatpush1.msra.mxu0 0.0
  %72 = vmatprep.subr.mxu0 0.0
  %73 = vmatpush1.msra.mxu0 0.0
  %74 = vmatprep.subr.mxu0 0.0
  %75 = vmatpush1.msra.mxu0 0.0
  %76 = vmatprep.subr.mxu0 0.0
  %77 = vmatpush1.msra.mxu0 0.0
  %78 = vmatprep.subr.mxu0 0.0
  %79 = vmatpush1.msra.mxu0 0.0
  %80 = vmatprep.subr.mxu0 0.0
  %81 = vmatpush1.msra.mxu0 0.0
  %82 = vmatprep.subr.mxu0 0.0
  %83 = vmatpush1.msra.mxu0 0.0
  %84 = vmatprep.subr.mxu0 0.0
  %85 = vmatpush1.msra.mxu0 0.0
  %86 = vmatprep.subr.mxu0 0.0
  %87 = vmatpush1.msra.mxu0 0.0
  %88 = vmatprep.subr.mxu0 0.0
  %89 = vmatpush1.msra.mxu0 0.0
  %90 = vmatprep.subr.mxu0 0.0
  %91 = vmatpush1.msra.mxu0 0.0
  %92 = vmatprep.subr.mxu0 0.0
  %93 = vmatpush1.msra.mxu0 0.0
  %94 = vmatprep.subr.mxu0 0.0
  %95 = vmatpush1.msra.mxu0 0.0
  %96 = vmatprep.subr.mxu0 0.0
  %97 = vmatpush1.msra.mxu0 0.0
  %98 = vmatprep.subr.mxu0 0.0
  %99 = vmatpush1.msra.mxu0 0.0
  %100 = vmatprep.subr.mxu0 0.0
  %101 = vmatpush1.msra.mxu0 0.0
  %102 = vmatprep.subr.mxu0 0.0
  %103 = vmatpush1.msra.mxu0 0.0
  %104 = vmatprep.subr.mxu0 0.0
  %105 = vmatpush1.msra.mxu0 0.0
  %106 = vmatprep.subr.mxu0 0.0
  %107 = vmatpush1.msra.mxu0 0.0
  %108 = vmatprep.mubr.f32.mxu0 0.0
  %109 = vmatmul.mubr.f32.gmra.mrb[0].mxu0 %v32
  %v110 = vpop.f32.mrb[0].mxu0
  %v111 = vadd.f32 %v23, %v110
  %v112 = vpop.f32.mrb[0].mxu0
  %v113 = vadd.f32 %v23, %v112
  %114 = vmatprep.mubr.f32.mxu0 0.0
  %115 = vmatmul.mubr.f32.gmra.mrb[0].mxu0 %v35
  %v116 = vpop.f32.mrb[0].mxu0
  %v117 = vadd.f32 %v28, %v116
  %v118 = vpop.f32.mrb[0].mxu0
  %v119 = vadd.f32 %v28, %v118
  %120 = vdwg.mxu0
  %v121 = vmul.f32 %v111, 0.5
  %v122 = vmul.f32 %v113, 0.5
  %v123 = vmul.f32 %v117, 0.5
  %v124 = vmul.f32 %v119, 0.5
  %v125 = vtanh.pop %v121
  %v126 = vtanh.pop %v122
  %v127 = vtanh.pop %v123
  %v128 = vtanh.pop %v124
  %v129 = vadd.f32 %v125, 1.0
  %v130 = vadd.f32 %v126, 1.0
  %v131 = vadd.f32 %v127, 1.0
  %v132 = vadd.f32 %v128, 1.0
  %v133 = vmul.f32 %v129, 0.5
  %v134 = vmul.f32 %v130, 0.5
  %v135 = vmul.f32 %v131, 0.5
  %v136 = vmul.f32 %v132, 0.5
  %137 = vst [vmem:[%s3] sm:$0xff] %v133
  %138 = vst [vmem:[%s3 + $0x8] sm:$0xff] %v134
  %139 = vst [vmem:[%s3 + $0x10] sm:$0x3] %v135
  %140 = vst [vmem:[%s3 + $0x18] sm:$0x3] %v136
  %s141 = scalar_lea.vmem %s2, 16
  %v142 = vld [vmem:[%s141] sm:$0x1f]
  %v143 = vld [vmem:[%s141 + $0x8] sm:$0x1f]
  %v145 = vsel %vm37, %v142, 0
  %v148 = vsel %vm37, %v143, 0
  %150 = vmatprep.subr.mxu0 %v148
  %151 = vmatpush1.msra.mxu0 %v145
  %152 = vmatprep.subr.mxu0 0.0
  %153 = vmatpush1.msra.mxu0 0.0
  %154 = vmatprep.subr.mxu0 0.0
  %155 = vmatpush1.msra.mxu0 0.0
  %156 = vmatprep.subr.mxu0 0.0
  %157 = vmatpush1.msra.mxu0 0.0
  %158 = vmatprep.subr.mxu0 0.0
  %159 = vmatpush1.msra.mxu0 0.0
  %160 = vmatprep.subr.mxu0 0.0
  %161 = vmatpush1.msra.mxu0 0.0
  %162 = vmatprep.subr.mxu0 0.0
  %163 = vmatpush1.msra.mxu0 0.0
  %164 = vmatprep.subr.mxu0 0.0
  %165 = vmatpush1.msra.mxu0 0.0
  %166 = vmatprep.subr.mxu0 0.0
  %167 = vmatpush1.msra.mxu0 0.0
  %168 = vmatprep.subr.mxu0 0.0
  %169 = vmatpush1.msra.mxu0 0.0
  %170 = vmatprep.subr.mxu0 0.0
  %171 = vmatpush1.msra.mxu0 0.0
  %172 = vmatprep.subr.mxu0 0.0
  %173 = vmatpush1.msra.mxu0 0.0
  %174 = vmatprep.subr.mxu0 0.0
  %175 = vmatpush1.msra.mxu0 0.0
  %176 = vmatprep.subr.mxu0 0.0
  %177 = vmatpush1.msra.mxu0 0.0
  %178 = vmatprep.subr.mxu0 0.0
  %179 = vmatpush1.msra.mxu0 0.0
  %180 = vmatprep.subr.mxu0 0.0
  %181 = vmatpush1.msra.mxu0 0.0
  %182 = vmatprep.subr.mxu0 0.0
  %183 = vmatpush1.msra.mxu0 0.0
  %184 = vmatprep.subr.mxu0 0.0
  %185 = vmatpush1.msra.mxu0 0.0
  %186 = vmatprep.subr.mxu0 0.0
  %187 = vmatpush1.msra.mxu0 0.0
  %188 = vmatprep.subr.mxu0 0.0
  %189 = vmatpush1.msra.mxu0 0.0
  %190 = vmatprep.subr.mxu0 0.0
  %191 = vmatpush1.msra.mxu0 0.0
  %192 = vmatprep.subr.mxu0 0.0
  %193 = vmatpush1.msra.mxu0 0.0
  %194 = vmatprep.subr.mxu0 0.0
  %195 = vmatpush1.msra.mxu0 0.0
  %196 = vmatprep.subr.mxu0 0.0
  %197 = vmatpush1.msra.mxu0 0.0
  %198 = vmatprep.subr.mxu0 0.0
  %199 = vmatpush1.msra.mxu0 0.0
  %200 = vmatprep.subr.mxu0 0.0
  %201 = vmatpush1.msra.mxu0 0.0
  %202 = vmatprep.subr.mxu0 0.0
  %203 = vmatpush1.msra.mxu0 0.0
  %204 = vmatprep.subr.mxu0 0.0
  %205 = vmatpush1.msra.mxu0 0.0
  %206 = vmatprep.subr.mxu0 0.0
  %207 = vmatpush1.msra.mxu0 0.0
  %208 = vmatprep.subr.mxu0 0.0
  %209 = vmatpush1.msra.mxu0 0.0
  %210 = vmatprep.subr.mxu0 0.0
  %211 = vmatpush1.msra.mxu0 0.0
  %212 = vmatprep.subr.mxu0 0.0
  %213 = vmatpush1.msra.mxu0 0.0
  %214 = vmatprep.mubr.f32.mxu0 0.0
  %215 = vmatmul.mubr.f32.gmra.mrb[0].mxu0 %v32
  %v216 = vpop.f32.mrb[0].mxu0
  %v217 = vadd.f32 %v23, %v216
  %v218 = vpop.f32.mrb[0].mxu0
  %v219 = vadd.f32 %v23, %v218
  %220 = vmatprep.mubr.f32.mxu0 0.0
  %221 = vmatmul.mubr.f32.gmra.mrb[0].mxu0 %v35
  %v222 = vpop.f32.mrb[0].mxu0
  %v223 = vadd.f32 %v28, %v222
  %v224 = vpop.f32.mrb[0].mxu0
  %v225 = vadd.f32 %v28, %v224
  %226 = vdwg.mxu0
  %v227 = vmul.f32 %v217, 0.5
  %v228 = vmul.f32 %v219, 0.5
  %v229 = vmul.f32 %v223, 0.5
  %v230 = vmul.f32 %v225, 0.5
  %v231 = vtanh.pop %v227
  %v232 = vtanh.pop %v228
  %v233 = vtanh.pop %v229
  %v234 = vtanh.pop %v230
  %v235 = vadd.f32 %v231, 1.0
  %v236 = vadd.f32 %v232, 1.0
  %v237 = vadd.f32 %v233, 1.0
  %v238 = vadd.f32 %v234, 1.0
  %v239 = vmul.f32 %v235, 0.5
  %v240 = vmul.f32 %v236, 0.5
  %v241 = vmul.f32 %v237, 0.5
  %v242 = vmul.f32 %v238, 0.5
  %s243 = scalar_lea.vmem %s3, 32
  %244 = vst [vmem:[%s243] sm:$0xff] %v239
  %245 = vst [vmem:[%s243 + $0x8] sm:$0xff] %v240
  %246 = vst [vmem:[%s243 + $0x10] sm:$0x3] %v241
  %247 = vst [vmem:[%s243 + $0x18] sm:$0x3] %v242
  // Predicated region
  $region14: #{tpu_custom_call.1} parent=0 // pred_check
    _
  $region15: #{tpu_custom_call.1} parent=0 // pred_check_branch
    %249 = sbr.rel (0) target = $region17
  $region16: #{tpu_custom_call.1} parent=0 // pred_region
    _
  $region17: #{tpu_custom_call.1} parent=0 // pred_fallthru
    _
  // Predicated region
  $region18: #{tpu_custom_call.1} parent=0 // pred_check
    _
  $region19: #{tpu_custom_call.1} parent=0 // pred_check_branch
    %251 = sbr.rel (0) target = $region21
  $region20: #{tpu_custom_call.1} parent=0 // pred_region
    _
  $region21: #{tpu_custom_call.1} parent=0 // pred_fallthru
    _

</llo_original>
